<compile_context>
chip_gen: v5e
topology: v5e:2x2
jax: 0.10.0
libtpu: 0.0.40
codegen_flags: <defaults>
</compile_context>

<pallas_src>
import jax
import jax.numpy as jnp
from jax.experimental import pallas as pl
from jax.experimental.pallas import tpu as pltpu


_LANE = 128
_RESIDENT_W_BYTES = 2 << 20   # resident W budget (double-buffered worst case 4 MiB)
_RESIDENT_MAX_NPAD = 8192     # keep the (tm, n_pad) output block bounded


def _round_up(x: int, m: int) -> int:
    return ((x + m - 1) // m) * m


def _floor_to(x: int, m: int) -> int:
    return max(m, (x // m) * m)


def _sublane_multiple(dtype) -> int:
    # f32 -> 8, bf16 -> 16, int8/fp8 -> 32 (sub-32-bit dtypes pack along sublanes).
    return max(8, 32 // jnp.dtype(dtype).itemsize)


# ----------------------------------------------------------------------------
# Weight-resident kernels: one (tm, K) @ (K, N) dot per M tile, no reduction grid.
# ----------------------------------------------------------------------------
def _resident_bias_kernel(x_ref, w_ref, b_ref, o_ref):
    acc = jnp.dot(x_ref[...], w_ref[...], preferred_element_type=jnp.float32)
    o_ref[...] = (acc + b_ref[...]).astype(o_ref.dtype)


def _resident_nobias_kernel(x_ref, w_ref, o_ref):
    acc = jnp.dot(x_ref[...], w_ref[...], preferred_element_type=jnp.float32)
    o_ref[...] = acc.astype(o_ref.dtype)


# ----------------------------------------------------------------------------
# Streamed fallback kernels: (M, N, K) grid, f32 VMEM accumulator over K.
# ----------------------------------------------------------------------------
def _stream_bias_kernel(x_ref, w_ref, b_ref, o_ref, acc_ref):
    @pl.when(pl.program_id(2) == 0)
    def _():
        # Initialize with the bias instead of adding it in the epilogue.
        acc_ref[...] = jnp.broadcast_to(b_ref[...], acc_ref.shape)

    acc_ref[...] += jnp.dot(x_ref[...], w_ref[...],
                            preferred_element_type=jnp.float32)

    @pl.when(pl.program_id(2) == pl.num_programs(2) - 1)
    def _():
        o_ref[...] = acc_ref[...].astype(o_ref.dtype)


def _stream_nobias_kernel(x_ref, w_ref, o_ref, acc_ref):
    @pl.when(pl.program_id(2) == 0)
    def _():
        acc_ref[...] = jnp.zeros_like(acc_ref)

    acc_ref[...] += jnp.dot(x_ref[...], w_ref[...],
                            preferred_element_type=jnp.float32)

    @pl.when(pl.program_id(2) == pl.num_programs(2) - 1)
    def _():
        o_ref[...] = acc_ref[...].astype(o_ref.dtype)


# ----------------------------------------------------------------------------
# Factory: one-time relayout of the clamped parameters + jitted forward.
# ----------------------------------------------------------------------------
def make_linear_clamped(weights, bias_values=None, *, compute_dtype=None,
                        max_resident_bytes=_RESIDENT_W_BYTES):
    """Build a forward() callable matching LinearClamped.forward.

    weights:       (out_features, in_features) -- fixed ("clamped") parameters
    bias_values:   (out_features,) or None
    compute_dtype: dtype for the relaid-out weight (default: weights.dtype;
                   pass jnp.bfloat16 to halve the weight HBM stream).
    """
    weights = jnp.asarray(weights)
    out_features, in_features = weights.shape
    has_bias = bias_values is not None
    w_dtype = jnp.dtype(compute_dtype) if compute_dtype is not None else weights.dtype
    w_itemsize = jnp.dtype(w_dtype).itemsize

    n_pad128 = _round_up(out_features, _LANE)
    resident = (in_features * n_pad128 * w_itemsize <= max_resident_bytes
                and n_pad128 <= _RESIDENT_MAX_NPAD)

    if resident:
        # Resident path: K left as-is (full-extent blocks), N padded lane-dense.
        n_pad = n_pad128
        tk_s = tn_s = None
        w_t = jnp.pad(weights.T.astype(w_dtype),
                      ((0, 0), (0, n_pad - out_features)))          # (K, n_pad)
    else:
        # Streamed path: both K and N padded to tile multiples (one-time cost).
        # TODO(synk): on v6e (128 MiB VMEM) tk could grow to 1024+ with
        # vmem_limit_bytes raised; kept at 512 so the footprint also fits v5e/v7x.
        tk_s = min(512, _round_up(in_features, _LANE))
        tn_s = min(512, _round_up(out_features, _LANE))
        k_pad_s = _round_up(in_features, tk_s)
        n_pad = _round_up(out_features, tn_s)
        w_t = jnp.pad(weights.T.astype(w_dtype),
                      ((0, k_pad_s - in_features), (0, n_pad - out_features)))

    if has_bias:
        b_row = jnp.pad(jnp.asarray(bias_values).astype(jnp.float32),
                        (0, n_pad - out_features)).reshape(1, n_pad)
    else:
        b_row = None

    @jax.jit
    def _run(x2d):
        m = x2d.shape[0]
        out_dtype = x2d.dtype
        x_itemsize = jnp.dtype(out_dtype).itemsize
        sub = _sublane_multiple(out_dtype)

        if resident:
            # Bound the double-buffered x / output blocks, keep tm sublane-aligned.
            x_row_bytes = max(1, in_features * x_itemsize)
            out_row_bytes = max(1, n_pad * 4)
            tm = min(512, _round_up(m, sub))
            tm = min(tm, _floor_to((1 << 20) // x_row_bytes, sub))
            tm = min(tm, _floor_to((2 << 20) // out_row_bytes, sub))

            in_specs = [
                pl.BlockSpec((tm, in_features), lambda i: (i, 0)),       # activations
                pl.BlockSpec((in_features, n_pad), lambda i: (0, 0)),    # resident W
            ]
            args = [x2d, w_t]
            if has_bias:
                in_specs.append(pl.BlockSpec((1, n_pad), lambda i: (0, 0)))
                args.append(b_row)
                kernel = _resident_bias_kernel
            else:
                kernel = _resident_nobias_kernel

            out_padded = pl.pallas_call(
                kernel,
                out_shape=jax.ShapeDtypeStruct((m, n_pad), out_dtype),
                grid_spec=pltpu.PrefetchScalarGridSpec(
                    num_scalar_prefetch=0,
                    grid=(pl.cdiv(m, tm),),
                    in_specs=in_specs,
                    out_specs=pl.BlockSpec((tm, n_pad), lambda i: (i, 0)),
                ),
                # TODO(synk): on v7x verify both TensorCores are busy; if not,
                # switch the M axis to pltpu.CORE_PARALLEL and confirm via trace.
                compiler_params=pltpu.CompilerParams(
                    dimension_semantics=("parallel",),
                ),
            )(*args)
        else:
            tk, tn = tk_s, tn_s
            k_pad = _round_up(in_features, tk)
            tm = min(256, _round_up(m, sub))

            # Only the K axis of x must be explicitly zero-padded (reduction axis);
            # partial M blocks are handled by masked output writes.
            if k_pad != in_features:
                x_k = jnp.pad(x2d, ((0, 0), (0, k_pad - in_features)))
            else:
                x_k = x2d

            grid = (pl.cdiv(m, tm), n_pad // tn, k_pad // tk)
            in_specs = [
                pl.BlockSpec((tm, tk), lambda i, j, k: (i, k)),
                pl.BlockSpec((tk, tn), lambda i, j, k: (k, j)),
            ]
            args = [x_k, w_t]
            if has_bias:
                in_specs.append(pl.BlockSpec((1, tn), lambda i, j, k: (0, j)))
                args.append(b_row)
                kernel = _stream_bias_kernel
            else:
                kernel = _stream_nobias_kernel

            out_padded = pl.pallas_call(
                kernel,
                out_shape=jax.ShapeDtypeStruct((m, n_pad), out_dtype),
                grid_spec=pltpu.PrefetchScalarGridSpec(
                    num_scalar_prefetch=0,
                    grid=grid,
                    in_specs=in_specs,
                    out_specs=pl.BlockSpec((tm, tn), lambda i, j, k: (i, j)),
                    scratch_shapes=[pltpu.VMEM((tm, tn), jnp.float32)],
                ),
                compiler_params=pltpu.CompilerParams(
                    dimension_semantics=("parallel", "parallel", "arbitrary"),
                ),
            )(*args)

        if n_pad != out_features:
            out_padded = out_padded[:, :out_features]
        return out_padded

    def forward(x, context=None):
        x = jnp.asarray(x)
        if x.ndim == 1:
            # Module does input.view(1, -1): result stays (1, out_features).
            x = x.reshape(1, -1)
        lead_shape = x.shape[:-1]
        out2d = _run(x.reshape(-1, in_features))
        return out2d.reshape(*lead_shape, out_features)

    return forward


# Convenience one-shot wrapper. NOTE: re-does the weight relayout and re-jits
# each call -- prefer make_linear_clamped for repeated use of the same params.
def linear_clamped(x, weight, bias=None):
    return make_linear_clamped(weight, bias)(x)


if __name__ == "__main__":
    # Deterministic "clamped" (non-learned) parameters, built in-script.
    in_features = 32
    out_features = 64
    batch = 8

    key = jax.random.PRNGKey(0)
    kx, kw, kb = jax.random.split(key, 3)

    x = jax.random.normal(kx, (batch, in_features), dtype=jnp.float32)
    weight = jax.random.normal(kw, (out_features, in_features), dtype=jnp.float32)
    bias_values = jax.random.normal(kb, (out_features,), dtype=jnp.float32)
    y_ref = x @ weight.T + bias_values

    # Weight-resident path (the common case for a clamped RFFN layer).
    linear = make_linear_clamped(weight, bias_values)
    y = jax.block_until_ready(linear(x))
    assert y.shape == (batch, out_features)
    assert jnp.allclose(y, y_ref, atol=1e-5, rtol=1e-5)

    # 1-D input path: module views to (1, in) -> output (1, out_features).
    y1 = jax.block_until_ready(linear(x[0]))
    assert y1.shape == (1, out_features)
    assert jnp.allclose(y1[0], y_ref[0], atol=1e-5, rtol=1e-5)

    # No-bias variant (specialized kernel, no bias DMA / add).
    linear_nb = make_linear_clamped(weight, None)
    y_nb = jax.block_until_ready(linear_nb(x))
    assert jnp.allclose(y_nb, x @ weight.T, atol=1e-5, rtol=1e-5)

    # bf16 weight + bf16 activations (native MXU path, f32 accumulation).
    x_bf = x.astype(jnp.bfloat16)
    linear_bf = make_linear_clamped(weight.astype(jnp.bfloat16), bias_values,
                                    compute_dtype=jnp.bfloat16)
    y_bf = jax.block_until_ready(linear_bf(x_bf))
    y_bf_ref = (x_bf.astype(jnp.float32) @ weight.astype(jnp.bfloat16).astype(jnp.float32).T
                + bias_values)
    assert y_bf.dtype == jnp.bfloat16
    assert jnp.allclose(y_bf.astype(jnp.float32), y_bf_ref, atol=5e-2, rtol=5e-2)

    # Streamed fallback path (forced), for coverage of the K-reduction kernel.
    linear_stream = make_linear_clamped(weight, bias_values, max_resident_bytes=0)
    y_s = jax.block_until_ready(linear_stream(x))
    assert jnp.allclose(y_s, y_ref, atol=1e-5, rtol=1e-5)

    print("KERNEL_OK")
</pallas_src>

<mosaic_0001>
module attributes {stable_mosaic.version = 11 : i64} {
  func.func @_resident_bias_kernel(%arg0: i32, %arg1: memref<8x32xf32, #tpu.memory_space<vmem>>, %arg2: memref<32x128xf32, #tpu.memory_space<vmem>>, %arg3: memref<1x128xf32, #tpu.memory_space<vmem>>, %arg4: memref<8x128xf32, #tpu.memory_space<vmem>>) attributes {dimension_semantics = [#tpu.dimension_semantics<parallel>], iteration_bounds = array<i64: 1>, scalar_prefetch = 0 : i64, scratch_operands = 0 : i64, tpu.core_type = #tpu.core_type<tc>, window_params = [{transform_indices = @transform_0, window_bounds = array<i64: 8, 32>}, {pipeline_mode = #tpu.pipeline_mode<synchronous>, transform_indices = @transform_1, window_bounds = array<i64: 32, 128>}, {pipeline_mode = #tpu.pipeline_mode<synchronous>, transform_indices = @transform_2, window_bounds = array<i64: 1, 128>}, {transform_indices = @transform_3, window_bounds = array<i64: 8, 128>}]} {
    %c0 = arith.constant 0 : index
    %c0_0 = arith.constant 0 : index
    %0 = vector.load %arg1[%c0, %c0_0] : memref<8x32xf32, #tpu.memory_space<vmem>>, vector<8x32xf32>
    %c0_1 = arith.constant 0 : index
    %c0_2 = arith.constant 0 : index
    %1 = vector.load %arg2[%c0_1, %c0_2] : memref<32x128xf32, #tpu.memory_space<vmem>>, vector<32x128xf32>
    %cst = arith.constant dense<0.000000e+00> : vector<8x128xf32>
    %2 = tpu.matmul %0, %1, %cst {dimension_numbers = #tpu.dot_dimension_numbers<[1], [0], [0], [1], [0, 0, 1, 1], [], []>} : vector<8x32xf32>, vector<32x128xf32>, vector<8x128xf32> -> vector<8x128xf32>
    %c0_3 = arith.constant 0 : index
    %c0_4 = arith.constant 0 : index
    %3 = vector.load %arg3[%c0_3, %c0_4] : memref<1x128xf32, #tpu.memory_space<vmem>>, vector<1x128xf32>
    %4 = vector.broadcast %3 : vector<1x128xf32> to vector<8x128xf32>
    %5 = arith.addf %2, %4 : vector<8x128xf32>
    %c0_5 = arith.constant 0 : index
    %c0_6 = arith.constant 0 : index
    %6 = vector.load %arg4[%c0_5, %c0_6] : memref<8x128xf32, #tpu.memory_space<vmem>>, vector<8x128xf32>
    tpu.vector_store %arg4[%c0_5, %c0_6], %5 {strides = array<i32>} : memref<8x128xf32, #tpu.memory_space<vmem>>, vector<8x128xf32>,
    return
  }
  func.func @transform_0(%arg0: i32) -> (i32, i32) {
    %c0_i32 = arith.constant 0 : i32
    %c0_i32_0 = arith.constant 0 : i32
    return %arg0, %c0_i32 : i32, i32
  }
  func.func @transform_1(%arg0: i32) -> (i32, i32) {
    %c0_i32 = arith.constant 0 : i32
    %c0_i32_0 = arith.constant 0 : i32
    %c0_i32_1 = arith.constant 0 : i32
    return %c0_i32, %c0_i32_0 : i32, i32
  }
  func.func @transform_2(%arg0: i32) -> (i32, i32) {
    %c0_i32 = arith.constant 0 : i32
    %c0_i32_0 = arith.constant 0 : i32
    %c0_i32_1 = arith.constant 0 : i32
    return %c0_i32, %c0_i32_0 : i32, i32
  }
  func.func @transform_3(%arg0: i32) -> (i32, i32) {
    %c0_i32 = arith.constant 0 : i32
    %c0_i32_0 = arith.constant 0 : i32
    return %arg0, %c0_i32 : i32, i32
  }
}

</mosaic_0001>

<llo_original>
// kernel: _run.1
$region0: #{_run.1}
  #allocation0 [shape = 'u32[]', space=smem, size = 0x4, offset = 0x4, fixed_abs, tag = 'smem constant byte address 0x4 - core index']
  #allocation1 [shape = 'u32[72,128]{1,0:T(1,128)}', space=vmem, size = 0x9000, scoped, tag = 'internal scratch']
  %s0 = inlined_call_operand.hbm [shape: f32[8,32], index: 0, kind: input, shape index: {}]
  %s1 = inlined_call_operand.hbm [shape: f32[32,128], index: 1, kind: input, shape index: {}]
  %s2 = inlined_call_operand.vmem [shape: f32[1,128], index: 2, kind: input, shape index: {}]
  %s3 = inlined_call_operand.hbm [shape: f32[8,128], index: 3, kind: output, shape index: {}]
  %s4 = sld [smem:[#allocation0]]
  $region30: #{_run.1} parent=0
    _
  %s6 = ssub.s32 1, %s4
  %s7 = scalar_select 0, %s6, %s4
  $region1: #{_run.1} parent=0
    #allocation2 [shape = 'u8[4096]{0}', space=vmem, size = 0x1000, scoped, tag = 'input window, operand 0, single buffered']
    #allocation3 [shape = 's32[1]{0}', space=sflag, size = 0x4, scoped, tag = 'scoped memory for _run.1']
    #allocation4 [shape = 's32[1]{0}', space=sflag, size = 0x4, scoped, tag = 'scoped memory for _run.1']
    #allocation5 [shape = 'u8[16384]{0}', space=vmem, size = 0x4000, scoped, tag = 'input window, operand 1, single buffered']
    #allocation6 [shape = 's32[1]{0}', space=sflag, size = 0x4, scoped, tag = 'scoped memory for _run.1']
    #allocation7 [shape = 'u8[4096]{0}', space=vmem, size = 0x1000, scoped, tag = 'output window, operand 0, single buffered']
    %8 = vsyncpa [#allocation3], 0
    %9 = vsyncpa [#allocation6], 0
    %10 = vsyncpa [#allocation4], 0
    // Predicated region
    $region2: #{_run.1} parent=1 // pred_check
      _
    $region3: #{_run.1} parent=1 // pred_check_branch
      %12 = sbr.rel (0) target = $region5
    $region4: #{_run.1} parent=1 // pred_region
      %14 = vsyncadd [#allocation3], 0
      %s16 = sshll.u32 %s0, 4
      %s17 = int_to_ptr.hbm [resolvable:$true] %s16
      %s18 = sshll.u32 [#allocation2], 4
      %s19 = int_to_ptr.vmem [resolvable:$true] %s18
      %21 = dma.hbm_to_vmem [thread:$0]  %s17, 128, %s19, [#allocation3]
    $region5: #{_run.1} parent=1 // pred_fallthru
      _
    // Predicated region
    $region6: #{_run.1} parent=1 // pred_check
      _
    $region7: #{_run.1} parent=1 // pred_check_branch
      %23 = sbr.rel (0) target = $region9
    $region8: #{_run.1} parent=1 // pred_region
      %25 = vsyncadd [#allocation6], 0
      %s26 = sshll.u32 %s1, 4
      %s27 = int_to_ptr.hbm [resolvable:$true] %s26
      %s28 = sshll.u32 [#allocation5], 4
      %s29 = int_to_ptr.vmem [resolvable:$true] %s28
      %34 = dma.hbm_to_vmem [thread:$0]  %s27, 512, %s29, [#allocation6], 128, 128, 8
    $region9: #{_run.1} parent=1 // pred_fallthru
      _
    // Predicated region
    $region10: #{_run.1} parent=1 // pred_check
      _
    $region11: #{_run.1} parent=1 // pred_check_branch
      %36 = sbr.rel (0) target = $region13
    $region12: #{_run.1} parent=1 // pred_region
      _
    $region13: #{_run.1} parent=1 // pred_fallthru
      _
    // Predicated region
    $region14: #{_run.1} parent=1 // pred_check
      _
    $region15: #{_run.1} parent=1 // pred_check_branch
      %38 = sbr.rel (0) target = $region17
    $region16: #{_run.1} parent=1 // pred_region
      %40 = dma.done [#allocation3], 128
    $region17: #{_run.1} parent=1 // pred_fallthru
      _
    // Predicated region
    $region18: #{_run.1} parent=1 // pred_check
      _
    $region19: #{_run.1} parent=1 // pred_check_branch
      %42 = sbr.rel (0) target = $region21
    $region20: #{_run.1} parent=1 // pred_region
      %44 = dma.done [#allocation6], 512
    $region21: #{_run.1} parent=1 // pred_fallthru
      _
    %v45 = vld [vmem:[#allocation2] sm:$0xff]
    %v46 = vld [vmem:[#allocation5] sm:$0xff]
    %v47 = vld [vmem:[#allocation5 + $0x8] sm:$0xff]
    %v48 = vld [vmem:[#allocation5 + $0x10] sm:$0xff]
    %v49 = vld [vmem:[#allocation5 + $0x18] sm:$0xff]
    %v50 = vld [vmem:[%s2] sm:$0x1]
    %v52 = vperm.slane %v50, 0
    %vm54 = vcmask 261120
    %v56 = vsel %vm54, %v45, 0
    %58 = vmatpush.msra.mxu0 0.0
    %59 = vmatpush.msra.mxu0 0.0
    %60 = vmatpush.msra.mxu0 0.0
    %61 = vmatpush.msra.mxu0 0.0
    %62 = vmatpush.msra.mxu0 0.0
    %63 = vmatpush.msra.mxu0 0.0
    %64 = vmatpush.msra.mxu0 0.0
    %65 = vmatpush.msra.mxu0 0.0
    %66 = vmatpush.msra.mxu0 0.0
    %67 = vmatpush.msra.mxu0 0.0
    %68 = vmatpush.msra.mxu0 0.0
    %69 = vmatpush.msra.mxu0 0.0
    %70 = vmatpush.msra.mxu0 %v49
    %71 = vmatpush.msra.mxu0 %v48
    %72 = vmatpush.msra.mxu0 %v47
    %73 = vmatpush.msra.mxu0 %v46
    %74 = vmatmul.f32.gmra.mxu0 %v56
    %v75 = vpop.f32.mrf.mxu0
    %v76 = vadd.f32 %v52, %v75
    %77 = vdwg.mxu0
    %78 = vst [vmem:[#allocation7] sm:$0xff] %v76
    // Predicated region
    $region22: #{_run.1} parent=1 // pred_check
      _
    $region23: #{_run.1} parent=1 // pred_check_branch
      %80 = sbr.rel (0) target = $region25
    $region24: #{_run.1} parent=1 // pred_region
      %82 = vsyncadd [#allocation4], 0
      %s84 = sshll.u32 [#allocation7], 4
      %s85 = int_to_ptr.vmem [resolvable:$true] %s84
      %s86 = sshll.u32 %s3, 4
      %s87 = int_to_ptr.hbm [resolvable:$true] %s86
      %89 = dma.vmem_to_hbm [thread:$0]  %s85, 128, %s87, [#allocation4]
    $region25: #{_run.1} parent=1 // pred_fallthru
      _
    // Predicated region
    $region26: #{_run.1} parent=1 // pred_check
      _
    $region27: #{_run.1} parent=1 // pred_check_branch
      %91 = sbr.rel (0) target = $region29
    $region28: #{_run.1} parent=1 // pred_region
      %93 = dma.done [#allocation4], 128
    $region29: #{_run.1} parent=1 // pred_fallthru
      _
    %94 = vsyncpa [#allocation3], 1
    %95 = vsyncpa [#allocation6], 1
    %96 = vsyncpa [#allocation4], 1

</llo_original>
